<compile_context>
chip_gen: v7x
topology: tpu7x:2x2x1
jax: 0.10.0
libtpu: 0.0.40
codegen_flags: <defaults>
</compile_context>

<pallas_src>
import functools

import jax
import jax.numpy as jnp
from jax import lax
from jax.experimental import pallas as pl
from jax.experimental.pallas import tpu as pltpu

# Compat shim: newer jax exposes pltpu.CompilerParams, older TPUCompilerParams.
_CompilerParams = getattr(pltpu, "CompilerParams", None) or getattr(
    pltpu, "TPUCompilerParams"
)

_NEG_BIG = -1e9   # matches the PyTorch constant -1000000000.0
_EPS = 1e-6


# ----------------------------- kernel factory -------------------------------


def _make_pool_kernel(has_mask, do_mean, do_max, S, St, H):
    """Grid-accumulating pooling kernel specialized on (mask, pooling_type)."""
    has_tail = (S % St) != 0
    inv_S = 1.0 / float(S)

    def kernel(*refs):
        idx = 0
        x_ref = refs[idx]; idx += 1
        m_ref = None
        denom_ref = None
        if has_mask:
            m_ref = refs[idx]; idx += 1
            if do_mean:
                denom_ref = refs[idx]; idx += 1
        out_ref = refs[idx]; idx += 1
        scratch = refs[idx:]
        si = 0
        sum_acc = None
        max_acc = None
        if do_mean:
            sum_acc = scratch[si]; si += 1
        if do_max:
            max_acc = scratch[si]; si += 1

        s_id = pl.program_id(1)

        @pl.when(s_id == 0)
        def _init():
            if do_mean:
                sum_acc[...] = jnp.zeros(sum_acc.shape, sum_acc.dtype)
            if do_max:
                max_acc[...] = jnp.full(max_acc.shape, -jnp.inf, max_acc.dtype)

        # Accumulate this S-tile in float32 regardless of input dtype.
        x = x_ref[...].astype(jnp.float32)                    # (Bt, St, H)

        valid = None
        if has_tail:
            # Validity of each sequence row of this tile (ragged last tile).
            pos = lax.broadcasted_iota(jnp.int32, (1, St, 1), 1) + s_id * St
            valid = pos < S                                    # (1, St, 1)

        if has_mask:
            # mask arrives as a lane-dense (Bt, St) block; broadcast over H
            # in-kernel (one cheap relayout per tile, hidden under DMA slack).
            m = m_ref[...].astype(jnp.float32)[:, :, None]     # (Bt, St, 1)
            xm = x * m                                         # x = x * mask
            if do_mean:
                contrib = jnp.where(valid, xm, 0.0) if has_tail else xm
                sum_acc[...] += jnp.sum(contrib, axis=1)
            if do_max:
                # exact PyTorch formula: (x*mask + (mask - 1) * -1e9).max(dim=1)
                biased = xm + (m - 1.0) * _NEG_BIG
                if has_tail:
                    biased = jnp.where(valid, biased, -jnp.inf)
                max_acc[...] = jnp.maximum(max_acc[...], jnp.max(biased, axis=1))
        else:
            if do_mean:
                contrib = jnp.where(valid, x, 0.0) if has_tail else x
                sum_acc[...] += jnp.sum(contrib, axis=1)
            if do_max:
                xb = jnp.where(valid, x, -jnp.inf) if has_tail else x
                max_acc[...] = jnp.maximum(max_acc[...], jnp.max(xb, axis=1))

        @pl.when(s_id == pl.num_programs(1) - 1)
        def _finalize():
            pieces = []
            if do_mean:
                if has_mask:
                    # whole-S denominator, precomputed outside the kernel
                    mean = sum_acc[...] / denom_ref[...]
                else:
                    mean = sum_acc[...] * inv_S
                pieces.append(mean)
            if do_max:
                pieces.append(max_acc[...])
            out = pieces[0] if len(pieces) == 1 else jnp.concatenate(pieces, axis=-1)
            out_ref[...] = out.astype(out_ref.dtype)

    return kernel


# ------------------------- VMEM budget & tiling -------------------------------


def _vmem_config(block_budget_override=None):
    """Generation-aware (vmem_limit_bytes, per-block DMA budget)."""
    cap = 64 * 1024 * 1024  # conservative fallback (v7x per-TC VMEM)
    try:
        info = pltpu.get_tpu_info()
        for attr in ("vmem_capacity_bytes", "vmem_bytes", "vmem_size_bytes"):
            v = getattr(info, attr, None)
            if v:
                cap = int(v)
                break
    except Exception:
        pass
    # Leave headroom for Mosaic internals; never ask for more than 96 MiB.
    vmem_limit = max(32 * 1024 * 1024, min(cap * 3 // 4, 96 * 1024 * 1024))
    if block_budget_override is not None:
        budget = int(block_budget_override)
    else:
        # x (+mask) blocks are double-buffered -> per-step block bytes ~ limit/3.
        budget = vmem_limit // 3
    return vmem_limit, budget


def _choose_tiles(B, S, H, x_itemsize, mask_itemsize, has_mask, budget_bytes):
    # Batch tile: 8-aligned (or full B) so (B, out_h) output stores and the
    # 2D mask block's sublane dim stay dense/legal.  Bt always divides B.
    Bt = 8 if (B % 8 == 0) else B
    # dtype-native sublane multiple for the x block's S (sublane) dim.
    sub = {4: 8, 2: 16, 1: 32}.get(int(x_itemsize), 8)
    # With a mask, St is the mask block's lane dim -> multiple of 128
    # (128 is a multiple of every sublane requirement).
    align = 128 if has_mask else sub
    per_s = Bt * (H * x_itemsize + (mask_itemsize if has_mask else 0))
    st_cap = max(1, budget_bytes // max(1, per_s))
    if S <= st_cap:
        return Bt, S                       # whole sequence in one block
    st_max = max(align, (int(st_cap) // align) * align)
    for d in range(st_max, 0, -align):     # prefer an exact divisor of S
        if S % d == 0:
            return Bt, d
    return Bt, st_max                      # ragged tail handled in-kernel


# ------------------------------- wrapper -------------------------------------


@functools.partial(jax.jit, static_argnames=("pooling_type", "block_budget_bytes"))
def _pool_call(x, mask, pooling_type, block_budget_bytes=None):
    B, S, H = x.shape
    do_mean = pooling_type in ("mean", "synthetic")
    do_max = pooling_type in ("max", "synthetic")
    if not (do_mean or do_max):
        raise ValueError(f"Unknown pooling type: {pooling_type}")
    has_mask = mask is not None

    x_itemsize = jnp.dtype(x.dtype).itemsize
    vmem_limit, budget = _vmem_config(block_budget_bytes)
    Bt, St = _choose_tiles(B, S, H, x_itemsize, x_itemsize, has_mask, budget)
    grid = (B // Bt, pl.cdiv(S, St))

    out_h = 2 * H if (do_mean and do_max) else H
    out_shape = jax.ShapeDtypeStruct((B, out_h), x.dtype)

    in_specs = [pl.BlockSpec((Bt, St, H), lambda b, s: (b, s, 0))]
    args = [x]
    bytes_accessed = x.size * x_itemsize + B * out_h * x_itemsize
    if has_mask:
        # 2D (B, S) mask -> lane-dense blocks (no 128-lane padding per element).
        m2 = mask.astype(x.dtype)
        in_specs.append(pl.BlockSpec((Bt, St), lambda b, s: (b, s)))
        args.append(m2)
        bytes_accessed += m2.size * jnp.dtype(m2.dtype).itemsize
        if do_mean:
            # Whole-sequence denominator (O(B) data) computed once in XLA.
            denom = m2.astype(jnp.float32).sum(axis=1, keepdims=True) + _EPS  # (B, 1)
            in_specs.append(pl.BlockSpec((Bt, 1), lambda b, s: (b, 0)))
            args.append(denom)
            bytes_accessed += B * 4

    out_specs = pl.BlockSpec((Bt, out_h), lambda b, s: (b, 0))

    scratch_shapes = []
    if do_mean:
        scratch_shapes.append(pltpu.VMEM((Bt, H), jnp.float32))
    if do_max:
        scratch_shapes.append(pltpu.VMEM((Bt, H), jnp.float32))

    kernel = _make_pool_kernel(has_mask, do_mean, do_max, S, St, H)

    cost = pl.CostEstimate(
        flops=int(x.size) * (5 if has_mask else 1),
        transcendentals=0,
        bytes_accessed=int(bytes_accessed),
    )

    return pl.pallas_call(
        kernel,
        out_shape=out_shape,
        grid=grid,
        in_specs=in_specs,
        out_specs=out_specs,
        scratch_shapes=scratch_shapes,
        compiler_params=_CompilerParams(
            dimension_semantics=("parallel", "arbitrary"),
            vmem_limit_bytes=int(vmem_limit),
        ),
        cost_estimate=cost,
    )(*args)


def pooling(x, mask=None, pooling_type="mean", block_budget_bytes=None):
    """JAX/Pallas equivalent of Pooling(pooling_type)(x, mask)."""
    return _pool_call(x, mask, pooling_type, block_budget_bytes=block_budget_bytes)


# ------------------------ reference (pure jnp) --------------------------------


def pooling_ref(x, mask=None, pooling_type="mean"):
    if mask is not None:
        m = mask.astype(x.dtype)[:, :, None]
        xm = x * m
        mean_p = xm.sum(axis=1) / (m.sum(axis=1) + 1e-6)
        max_p = (xm + (m - 1.0) * (-1e9)).max(axis=1)
    else:
        mean_p = x.mean(axis=1)
        max_p = x.max(axis=1)
    if pooling_type == "mean":
        return mean_p
    if pooling_type == "max":
        return max_p
    if pooling_type == "synthetic":
        return jnp.concatenate([mean_p, max_p], axis=-1)
    raise ValueError(pooling_type)


# --------------------------------- main ---------------------------------------


if __name__ == "__main__":
    key = jax.random.PRNGKey(0)
    ok = True

    # (shape, forced block budget): the small shape matches the module; the
    # other two shrink the block budget to exercise the multi-tile accumulator
    # and the ragged-S tail path deterministically on any TPU generation.
    cases = [
        ((2, 8, 32), None),
        ((8, 1024, 128), 1 * 1024 * 1024),
        ((8, 1000, 128), 512 * 1024),
    ]

    for (B, S, H), budget in cases:
        kx, km, key = jax.random.split(key, 3)
        x = jax.random.normal(kx, (B, S, H), dtype=jnp.float32)
        # deterministic 0/1 mask with at least one valid position per row
        mask = (jax.random.uniform(km, (B, S)) > 0.3).astype(jnp.float32)
        mask = mask.at[:, 0].set(1.0)

        for ptype in ("mean", "max", "synthetic"):
            for m in (None, mask):
                out = jax.block_until_ready(
                    pooling(x, m, pooling_type=ptype, block_budget_bytes=budget))
                ref = pooling_ref(x, m, pooling_type=ptype)
                if not bool(jnp.allclose(out, ref, atol=1e-5, rtol=1e-5)):
                    ok = False

    print("KERNEL_OK" if ok else "KERNEL_MISMATCH")
</pallas_src>

<mosaic_0001>
module attributes {stable_mosaic.version = 11 : i64} {
  func.func @kernel(%arg0: i32, %arg1: i32, %arg2: memref<2x8x32xf32, #tpu.memory_space<vmem>>, %arg3: memref<2x32xf32, #tpu.memory_space<vmem>>, %arg4: memref<2x32xf32, #tpu.memory_space<vmem>>) attributes {dimension_semantics = [#tpu.dimension_semantics<parallel>, #tpu.dimension_semantics<arbitrary>], iteration_bounds = array<i64: 1, 1>, scalar_prefetch = 0 : i64, scratch_operands = 1 : i64, tpu.core_type = #tpu.core_type<tc>, window_params = [{transform_indices = @transform_0, window_bounds = array<i64: 2, 8, 32>}, {transform_indices = @transform_1, window_bounds = array<i64: 2, 32>}]} {
    %c0_i32 = arith.constant 0 : i32
    %0 = arith.cmpi eq, %arg1, %c0_i32 : i32
    %1 = arith.extui %0 : i1 to i32
    %c0_i32_0 = arith.constant 0 : i32
    %2 = arith.cmpi ne, %1, %c0_i32_0 : i32
    scf.if %2 {
      %cst_9 = arith.constant 0.000000e+00 : f32
      %11 = vector.broadcast %cst_9 : f32 to vector<2x32xf32>
      %c0_10 = arith.constant 0 : index
      %c0_11 = arith.constant 0 : index
      %12 = vector.load %arg4[%c0_10, %c0_11] : memref<2x32xf32, #tpu.memory_space<vmem>>, vector<2x32xf32>
      tpu.vector_store %arg4[%c0_10, %c0_11], %11 {strides = array<i32>} : memref<2x32xf32, #tpu.memory_space<vmem>>, vector<2x32xf32>,
    } else {
    }
    %c0 = arith.constant 0 : index
    %c0_1 = arith.constant 0 : index
    %c0_2 = arith.constant 0 : index
    %3 = vector.load %arg2[%c0, %c0_1, %c0_2] : memref<2x8x32xf32, #tpu.memory_space<vmem>>, vector<2x8x32xf32>
    %c0_3 = arith.constant 0 : index
    %c0_4 = arith.constant 0 : index
    %4 = vector.load %arg4[%c0_3, %c0_4] : memref<2x32xf32, #tpu.memory_space<vmem>>, vector<2x32xf32>
    %cst = arith.constant dense<0.000000e+00> : vector<2x32xf32>
    %5 = vector.multi_reduction <add>, %3, %cst [1] : vector<2x8x32xf32> to vector<2x32xf32>
    %6 = arith.addf %4, %5 : vector<2x32xf32>
    %c0_5 = arith.constant 0 : index
    %c0_6 = arith.constant 0 : index
    %7 = vector.load %arg4[%c0_5, %c0_6] : memref<2x32xf32, #tpu.memory_space<vmem>>, vector<2x32xf32>
    tpu.vector_store %arg4[%c0_5, %c0_6], %6 {strides = array<i32>} : memref<2x32xf32, #tpu.memory_space<vmem>>, vector<2x32xf32>,
    %c0_i32_7 = arith.constant 0 : i32
    %8 = arith.cmpi eq, %arg1, %c0_i32_7 : i32
    %9 = arith.extui %8 : i1 to i32
    %c0_i32_8 = arith.constant 0 : i32
    %10 = arith.cmpi ne, %9, %c0_i32_8 : i32
    scf.if %10 {
      %c0_9 = arith.constant 0 : index
      %c0_10 = arith.constant 0 : index
      %11 = vector.load %arg4[%c0_9, %c0_10] : memref<2x32xf32, #tpu.memory_space<vmem>>, vector<2x32xf32>
      %cst_11 = arith.constant 1.250000e-01 : f32
      %12 = vector.broadcast %cst_11 : f32 to vector<2x32xf32>
      %13 = arith.mulf %11, %12 : vector<2x32xf32>
      %c0_12 = arith.constant 0 : index
      %c0_13 = arith.constant 0 : index
      %14 = vector.load %arg3[%c0_12, %c0_13] : memref<2x32xf32, #tpu.memory_space<vmem>>, vector<2x32xf32>
      tpu.vector_store %arg3[%c0_12, %c0_13], %13 {strides = array<i32>} : memref<2x32xf32, #tpu.memory_space<vmem>>, vector<2x32xf32>,
    } else {
    }
    return
  }
  func.func @transform_0(%arg0: i32, %arg1: i32) -> (i32, i32, i32) {
    %c0_i32 = arith.constant 0 : i32
    %c0_i32_0 = arith.constant 0 : i32
    return %arg0, %arg1, %c0_i32 : i32, i32, i32
  }
  func.func @transform_1(%arg0: i32, %arg1: i32) -> (i32, i32) {
    %c0_i32 = arith.constant 0 : i32
    %c0_i32_0 = arith.constant 0 : i32
    return %arg0, %c0_i32 : i32, i32
  }
}

</mosaic_0001>

<llo_original>
// kernel: _pool_call.1
$region0: #{_pool_call.1}
  #allocation0 [shape = 'u32[]', space=smem, size = 0x4, offset = 0x4, fixed_abs, tag = 'smem constant byte address 0x4 - core index']
  #allocation1 [shape = 'u32[144,128]{1,0:T(1,128)}', space=vmem, size = 0x12000, scoped, tag = 'internal scratch']
  #allocation2 [shape = 'f32[2,32]{1,0:T(2,128)}', space=vmem, size = 0x400, scoped, tag = 'scratch operand']
  %s0 = inlined_call_operand.hbm [shape: f32[2,8,32], index: 0, kind: input, shape index: {}]
  %s1 = inlined_call_operand.hbm [shape: f32[2,32], index: 1, kind: output, shape index: {}]
  %s2 = sld [smem:[#allocation0]]
  $region26: #{_pool_call.1} parent=0
    _
  %s4 = ssub.s32 1, %s2
  %s5 = scalar_select 0, %s4, %s2
  $region1: #{_pool_call.1} parent=0
    #allocation3 [shape = 'u8[8192]{0}', space=vmem, size = 0x2000, scoped, tag = 'input window, operand 0, single buffered']
    #allocation4 [shape = 's32[1]{0}', space=sflag, size = 0x4, scoped, tag = 'scoped memory for _pool_call.1']
    #allocation5 [shape = 's32[1]{0}', space=sflag, size = 0x4, scoped, tag = 'scoped memory for _pool_call.1']
    #allocation6 [shape = 'u8[1024]{0}', space=vmem, size = 0x400, scoped, tag = 'output window, operand 0, single buffered']
    %6 = vsyncpa [#allocation4], 0
    %7 = vsyncpa [#allocation5], 0
    // Predicated region
    $region2: #{_pool_call.1} parent=1 // pred_check
      _
    $region3: #{_pool_call.1} parent=1 // pred_check_branch
      %9 = sbr.rel (0) target = $region5
    $region4: #{_pool_call.1} parent=1 // pred_region
      %s11 = ssub.s32 256, 256
      %12 = vsyncadd [#allocation4], %s11
      %s13 = sshll.u32 [#allocation3], 4
      %s14 = int_to_ptr.vmem [resolvable:$true] %s13
      %19 = dma.hbm_to_vmem [thread:$0]  %s0, 256, %s14, [#allocation4], 128, 128, 8
    $region5: #{_pool_call.1} parent=1 // pred_fallthru
      _
    // Predicated region
    $region6: #{_pool_call.1} parent=1 // pred_check
      _
    $region7: #{_pool_call.1} parent=1 // pred_check_branch
      %21 = sbr.rel (0) target = $region9
    $region8: #{_pool_call.1} parent=1 // pred_region
      %22 = dma.done [#allocation4], 256
    $region9: #{_pool_call.1} parent=1 // pred_fallthru
      _
    %p23 = scmp.eq.s32.totalorder 0, 0
    // Predicated region
    $region10: #{_pool_call.1} parent=1 // pred_check
      %p24 = pneg %p23
    $region11: #{_pool_call.1} parent=1 // pred_check_branch
      %26 = sbr.rel (%p24) target = $region13
    $region12: #{_pool_call.1} parent=1 // pred_region
      %vm27 = vcmask 254976
      %28 = vst.msk [vmem:[#allocation2] sm:$0x3] %vm27, 0.0
    $region13: #{_pool_call.1} parent=1 // pred_fallthru
      _
    %v29 = vld [vmem:[#allocation3] sm:$0xff]
    %v30 = vld [vmem:[#allocation3 + $0x8] sm:$0xff]
    %v31 = vld [vmem:[#allocation2] sm:$0x3]
    %vm32 = vcmask 261120
    %v33 = vsel %vm32, %v29, 0.0
    %v34 = vrot.slane %v33, 4
    %v35 = vadd.f32 %v33, %v34
    %v36 = vrot.slane %v35, 2
    %v37 = vadd.f32 %v35, %v36
    %v38 = vrot.slane %v37, 1
    %v39 = vadd.f32 %v37, %v38
    %v40 = vsel %vm32, %v30, 0.0
    %v41 = vrot.slane %v40, 4
    %v42 = vadd.f32 %v40, %v41
    %v43 = vrot.slane %v42, 2
    %v44 = vadd.f32 %v42, %v43
    %v45 = vrot.slane %v44, 1
    %v46 = vadd.f32 %v44, %v45
    %vm49 = vcmask 1041409
    %v50 = vsel %vm49, %v46, %v39
    %v52 = vadd.f32 %v31, %v50
    %vm53 = vcmask 254976
    %54 = vst.msk [vmem:[#allocation2] sm:$0x3] %vm53, %v52
    // Predicated region
    $region14: #{_pool_call.1} parent=1 // pred_check
      %p55 = pneg %p23
    $region15: #{_pool_call.1} parent=1 // pred_check_branch
      %57 = sbr.rel (%p55) target = $region17
    $region16: #{_pool_call.1} parent=1 // pred_region
      %v58 = vld [vmem:[#allocation2] sm:$0x3]
      %v59 = vmul.f32 %v58, 0.125
      %60 = vst.msk [vmem:[#allocation6] sm:$0x3] %vm53, %v59
    $region17: #{_pool_call.1} parent=1 // pred_fallthru
      _
    // Predicated region
    $region18: #{_pool_call.1} parent=1 // pred_check
      _
    $region19: #{_pool_call.1} parent=1 // pred_check_branch
      %62 = sbr.rel (0) target = $region21
    $region20: #{_pool_call.1} parent=1 // pred_region
      %s64 = ssub.s32 32, 32
      %65 = vsyncadd [#allocation5], %s64
      %s67 = sshll.u32 [#allocation6], 4
      %s68 = int_to_ptr.vmem [resolvable:$true] %s67
      %70 = dma.vmem_to_hbm [thread:$0]  %s68, 32, %s1, [#allocation5]
    $region21: #{_pool_call.1} parent=1 // pred_fallthru
      _
    // Predicated region
    $region22: #{_pool_call.1} parent=1 // pred_check
      _
    $region23: #{_pool_call.1} parent=1 // pred_check_branch
      %72 = sbr.rel (0) target = $region25
    $region24: #{_pool_call.1} parent=1 // pred_region
      %73 = dma.done [#allocation5], 32
    $region25: #{_pool_call.1} parent=1 // pred_fallthru
      _
    %74 = vsyncpa [#allocation4], 1
    %75 = vsyncpa [#allocation5], 1

</llo_original>
